<compile_context>
chip_gen: v7x
topology: tpu7x:2x2x1
jax: 0.10.0
libtpu: 0.0.40
codegen_flags: <defaults>
</compile_context>

<pallas_src>
import functools
import math

import jax
import jax.numpy as jnp
from jax.experimental import pallas as pl
from jax.experimental.pallas import tpu as pltpu


def _round_up(x, m):
    return (x + m - 1) // m * m


def _bce_mask_kernel(ignore_index, n_rows, row_tile, tiles_per_group,
                     x_ref, t_ref, psum_ref, pcnt_ref):
    p = pl.program_id(0)          # parallel group (megacore axis on v7x)
    i = pl.program_id(1)          # reduction over this group's row tiles

    @pl.when(i == 0)
    def _init():
        psum_ref[...] = jnp.zeros_like(psum_ref)
        pcnt_ref[...] = jnp.zeros_like(pcnt_ref)

    # Upcast per tile: inputs may be bf16 in HBM; compute in f32.
    x = x_ref[...].astype(jnp.float32)                      # (row_tile, C)
    t = t_ref[...]                                          # (row_tile, 1) int32

    # Logical (unclamped) tile id -> global row ids. Fully-out-of-range tiles (when the
    # tile count is not divisible by the parallel-group count) and the ragged tail are
    # masked out entirely via `valid`, so the clamped duplicate DMA never contributes.
    tile_idx = p * tiles_per_group + i
    row_ids = tile_idx * row_tile + jax.lax.broadcasted_iota(
        jnp.int32, (row_tile, 1), 0)
    valid = row_ids < n_rows                                # (row_tile, 1) bool

    # binary_cross_entropy_with_logits vs one-hot(target), numerically stable:
    #   max(x,0) - x*onehot + log1p(exp(-|x|))
    # The one-hot multiply is replaced by a select (no f32 one-hot materialized).
    col = jax.lax.broadcasted_iota(jnp.int32, x.shape, 1)
    losses = (jnp.maximum(x, 0.0)
              - jnp.where(col == t, x, 0.0)
              + jnp.log1p(jnp.exp(-jnp.abs(x))))            # (row_tile, C)

    # Cross-lane row sums on the otherwise-idle MXU.
    ones_col = jnp.ones((x.shape[1], 1), dtype=jnp.float32)
    row_sums = jnp.dot(losses, ones_col,
                       preferred_element_type=jnp.float32)  # (row_tile, 1)

    # Per-row masking (masked_fill of ignored rows + ragged/OOB rows), then accumulate
    # into the resident per-row output block (written back to HBM once per group).
    ignore = t == ignore_index                              # (row_tile, 1) bool
    keep = jnp.logical_and(valid, jnp.logical_not(ignore))
    psum_ref[0] = psum_ref[0] + jnp.where(keep, row_sums, 0.0)
    pcnt_ref[0] = pcnt_ref[0] + jnp.where(
        jnp.logical_and(valid, ignore), 1.0, 0.0)


def bce_with_mask_logits_loss(logits, target, ignore_index=0, max_rows_per_tile=None):
    """logits: (..., C) float (f32 or bf16), target: (...) int. Returns shape-(1,) f32 loss."""
    *lead, C = logits.shape
    N = math.prod(lead) if lead else 1
    x2d = logits.reshape(N, C)                              # NO wrapper upcast
    t2d = target.reshape(N, 1).astype(jnp.int32)

    itemsize = jnp.dtype(x2d.dtype).itemsize
    c_pad = _round_up(C, 128)

    # Chip-aware VMEM budgeting: v5e/v6e have 128 MiB physical VMEM, v7x only 64 MiB.
    try:
        vmem_cap = int(pltpu.get_tpu_info().vmem_capacity_bytes)
    except Exception:
        vmem_cap = 64 * 1024 * 1024                         # conservative (v7x-sized)
    big_vmem = vmem_cap >= 100 * 1024 * 1024
    vmem_limit = (64 if big_vmem else 40) * 1024 * 1024
    budget = (28 if big_vmem else 18) * 1024 * 1024

    # Per-row VMEM working set: double-buffered input block + ~4 f32 tile-wide
    # intermediates (x_f32, col iota, losses, select temp) + (rows,1)-shaped columns
    # (targets x2 buffers, two resident accumulator blocks, row_sums, masks).
    per_row = 2 * c_pad * itemsize + 4 * c_pad * 4 + 8 * 128 * 4
    rows = (budget // per_row) // 8 * 8
    rows = max(8, min(rows, 8192))
    if max_rows_per_tile is not None:
        rows = max(8, min(rows, _round_up(max_rows_per_tile, 8)))
    rows = min(rows, _round_up(N, 8))

    num_tiles = pl.cdiv(N, rows)
    n_par = 2 if num_tiles >= 2 else 1                      # v7x megacore split
    tpg = pl.cdiv(num_tiles, n_par)                         # tiles per parallel group
    last_tile = num_tiles - 1

    def in_map(p, i):
        # Clamp so the DMA never targets a block past the array; the kernel masks the
        # (rare) duplicated tile out via its logical row ids.
        return (jnp.minimum(p * tpg + i, last_tile), 0)

    kernel = functools.partial(_bce_mask_kernel, ignore_index, N, rows, tpg)
    psum, pcnt = pl.pallas_call(
        kernel,
        out_shape=(jax.ShapeDtypeStruct((n_par, rows, 1), jnp.float32),
                   jax.ShapeDtypeStruct((n_par, rows, 1), jnp.float32)),
        grid_spec=pltpu.PrefetchScalarGridSpec(
            num_scalar_prefetch=0,
            grid=(n_par, tpg),
            in_specs=[
                pl.BlockSpec((rows, C), in_map),            # logits row-tile
                pl.BlockSpec((rows, 1), in_map),            # target ids for those rows
            ],
            out_specs=[
                pl.BlockSpec((1, rows, 1), lambda p, i: (p, 0, 0)),  # per-group loss partials
                pl.BlockSpec((1, rows, 1), lambda p, i: (p, 0, 0)),  # per-group ignore counts
            ],
        ),
        compiler_params=pltpu.CompilerParams(
            dimension_semantics=("parallel", "arbitrary"),
            vmem_limit_bytes=vmem_limit,
        ),
        cost_estimate=pl.CostEstimate(
            flops=8 * N * C,
            transcendentals=2 * N * C,
            bytes_accessed=N * C * itemsize + N * 4 + 2 * n_par * rows * 4,
        ),
    )(x2d, t2d)

    total = jnp.sum(psum)
    # NOTE: mirrors the PyTorch module exactly — the denominator is the number of
    # *ignored* positions, clamped to at least 1 (NOT the number of kept rows).
    count = jnp.maximum(jnp.sum(pcnt), 1.0)
    return (total / count).reshape(1)


def _reference(logits, target, ignore_index=0):
    """Pure-JAX reference for verification."""
    x = logits.astype(jnp.float32)
    z = jax.nn.one_hot(target, x.shape[-1], dtype=jnp.float32)
    losses = jnp.maximum(x, 0.0) - x * z + jnp.log1p(jnp.exp(-jnp.abs(x)))
    mask = target == ignore_index
    losses = jnp.where(mask[..., None], 0.0, losses)
    count = jnp.maximum(jnp.sum(mask).astype(jnp.float32), 1.0)
    return (jnp.sum(losses) / count).reshape(1)


if __name__ == "__main__":
    key = jax.random.PRNGKey(0)
    kx, kt, kx2, kt2, kx3, kt3 = jax.random.split(key, 6)

    # Case 1: batch=2, seq=8, classes=32 (f32), single tile / single parallel group.
    B, S, C = 2, 8, 32
    logits = jax.random.normal(kx, (B, S, C), dtype=jnp.float32)
    target = jax.random.randint(kt, (B, S), 0, C, dtype=jnp.int32)
    target = target.at[0, 0].set(0).at[1, 3].set(0)          # exercise ignore_index=0
    loss = bce_with_mask_logits_loss(logits, target, ignore_index=0)
    jax.block_until_ready(loss)
    ref = _reference(logits, target, ignore_index=0)
    assert jnp.allclose(loss, ref, atol=1e-4, rtol=1e-4), (loss, ref)

    # Case 2: ragged row count + 2 tiles -> exercises the 2-way parallel partials.
    B2, S2 = 3, 5                                            # N = 15, not a multiple of 8
    logits2 = jax.random.normal(kx2, (B2, S2, C), dtype=jnp.float32)
    target2 = jax.random.randint(kt2, (B2, S2), 0, C, dtype=jnp.int32)
    target2 = target2.at[2, 4].set(0)
    loss2 = bce_with_mask_logits_loss(logits2, target2, ignore_index=0,
                                      max_rows_per_tile=8)
    jax.block_until_ready(loss2)
    ref2 = _reference(logits2, target2, ignore_index=0)
    assert jnp.allclose(loss2, ref2, atol=1e-4, rtol=1e-4), (loss2, ref2)

    # Case 3: odd tile count (3 tiles over 2 parallel groups) -> exercises the clamped
    # out-of-range logical tile, which must contribute exactly zero.
    B3, S3 = 1, 17                                           # N = 17 -> 3 tiles of 8 rows
    logits3 = jax.random.normal(kx3, (B3, S3, C), dtype=jnp.float32)
    target3 = jax.random.randint(kt3, (B3, S3), 0, C, dtype=jnp.int32)
    target3 = target3.at[0, 11].set(0)
    loss3 = bce_with_mask_logits_loss(logits3, target3, ignore_index=0,
                                      max_rows_per_tile=8)
    jax.block_until_ready(loss3)
    ref3 = _reference(logits3, target3, ignore_index=0)
    assert jnp.allclose(loss3, ref3, atol=1e-4, rtol=1e-4), (loss3, ref3)

    # Case 4: bf16 logits stay bf16 in HBM; upcast happens inside the kernel.
    logits_bf16 = logits.astype(jnp.bfloat16)
    loss4 = bce_with_mask_logits_loss(logits_bf16, target, ignore_index=0)
    jax.block_until_ready(loss4)
    ref4 = _reference(logits_bf16, target, ignore_index=0)
    assert jnp.allclose(loss4, ref4, atol=1e-3, rtol=1e-3), (loss4, ref4)

    print("KERNEL_OK")
</pallas_src>

<mosaic_0001>
module attributes {stable_mosaic.version = 11 : i64} {
  func.func @_bce_mask_kernel(%arg0: i32, %arg1: i32, %arg2: memref<16x32xf32, #tpu.memory_space<vmem>>, %arg3: memref<16x1xi32, #tpu.memory_space<vmem>>, %arg4: memref<1x16x1xf32, #tpu.memory_space<vmem>>, %arg5: memref<1x16x1xf32, #tpu.memory_space<vmem>>) attributes {dimension_semantics = [#tpu.dimension_semantics<parallel>, #tpu.dimension_semantics<arbitrary>], iteration_bounds = array<i64: 1, 1>, scalar_prefetch = 0 : i64, scratch_operands = 0 : i64, tpu.core_type = #tpu.core_type<tc>, window_params = [{transform_indices = @transform_0, window_bounds = array<i64: 16, 32>}, {transform_indices = @transform_1, window_bounds = array<i64: 16, 1>}, {transform_indices = @transform_2, window_bounds = array<i64: 1, 16, 1>}, {transform_indices = @transform_3, window_bounds = array<i64: 1, 16, 1>}]} {
    %c0_i32 = arith.constant 0 : i32
    %0 = arith.cmpi eq, %arg1, %c0_i32 : i32
    %1 = arith.extui %0 : i1 to i32
    %c0_i32_0 = arith.constant 0 : i32
    %2 = arith.cmpi ne, %1, %c0_i32_0 : i32
    scf.if %2 {
      %cst_26 = arith.constant 0.000000e+00 : f32
      %51 = vector.broadcast %cst_26 : f32 to vector<1x16x1xf32>
      %c0_27 = arith.constant 0 : index
      %c0_28 = arith.constant 0 : index
      %c0_29 = arith.constant 0 : index
      %52 = vector.load %arg4[%c0_27, %c0_28, %c0_29] : memref<1x16x1xf32, #tpu.memory_space<vmem>>, vector<1x16x1xf32>
      tpu.vector_store %arg4[%c0_27, %c0_28, %c0_29], %51 {strides = array<i32>} : memref<1x16x1xf32, #tpu.memory_space<vmem>>, vector<1x16x1xf32>,
      %cst_30 = arith.constant 0.000000e+00 : f32
      %53 = vector.broadcast %cst_30 : f32 to vector<1x16x1xf32>
      %c0_31 = arith.constant 0 : index
      %c0_32 = arith.constant 0 : index
      %c0_33 = arith.constant 0 : index
      %54 = vector.load %arg5[%c0_31, %c0_32, %c0_33] : memref<1x16x1xf32, #tpu.memory_space<vmem>>, vector<1x16x1xf32>
      tpu.vector_store %arg5[%c0_31, %c0_32, %c0_33], %53 {strides = array<i32>} : memref<1x16x1xf32, #tpu.memory_space<vmem>>, vector<1x16x1xf32>,
    } else {
    }
    %c0 = arith.constant 0 : index
    %c0_1 = arith.constant 0 : index
    %3 = vector.load %arg2[%c0, %c0_1] : memref<16x32xf32, #tpu.memory_space<vmem>>, vector<16x32xf32>
    %c0_2 = arith.constant 0 : index
    %c0_3 = arith.constant 0 : index
    %4 = vector.load %arg3[%c0_2, %c0_3] : memref<16x1xi32, #tpu.memory_space<vmem>>, vector<16x1xi32>
    %c1_i32 = arith.constant 1 : i32
    %5 = arith.muli %arg0, %c1_i32 : i32
    %6 = arith.addi %5, %arg1 : i32
    %c16_i32 = arith.constant 16 : i32
    %7 = arith.muli %6, %c16_i32 : i32
    %8 = tpu.iota {dimensions = array<i32: 0>} : vector<16x1xi32>
    %9 = vector.broadcast %7 : i32 to vector<16x1xi32>
    %10 = arith.addi %9, %8 : vector<16x1xi32>
    %c16_i32_4 = arith.constant 16 : i32
    %11 = vector.broadcast %c16_i32_4 : i32 to vector<16x1xi32>
    %12 = arith.cmpi slt, %10, %11 : vector<16x1xi32>
    %13 = tpu.iota {dimensions = array<i32: 1>} : vector<16x32xi32>
    %cst = arith.constant 0.000000e+00 : f32
    %14 = vector.broadcast %cst : f32 to vector<16x32xf32>
    %15 = arith.maximumf %3, %14 : vector<16x32xf32>
    %16 = vector.broadcast %4 : vector<16x1xi32> to vector<16x32xi32>
    %17 = arith.cmpi eq, %13, %16 : vector<16x32xi32>
    %cst_5 = arith.constant 0.000000e+00 : f32
    %18 = vector.broadcast %cst_5 : f32 to vector<16x32xf32>
    %19 = arith.select %17, %3, %18 : vector<16x32xi1>, vector<16x32xf32>
    %20 = arith.subf %15, %19 : vector<16x32xf32>
    %21 = math.absf %3 : vector<16x32xf32>
    %cst_6 = arith.constant 0.000000e+00 : f32
    %22 = vector.broadcast %cst_6 : f32 to vector<16x32xf32>
    %23 = arith.subf %22, %21 : vector<16x32xf32>
    %24 = math.exp %23 : vector<16x32xf32>
    %25 = math.log1p %24 : vector<16x32xf32>
    %26 = arith.addf %20, %25 : vector<16x32xf32>
    %cst_7 = arith.constant 1.000000e+00 : f32
    %27 = vector.broadcast %cst_7 : f32 to vector<32x1xf32>
    %cst_8 = arith.constant dense<0.000000e+00> : vector<16x1xf32>
    %28 = tpu.matmul %26, %27, %cst_8 {dimension_numbers = #tpu.dot_dimension_numbers<[1], [0], [0], [1], [0, 0, 1, 1], [], []>} : vector<16x32xf32>, vector<32x1xf32>, vector<16x1xf32> -> vector<16x1xf32>
    %c0_i32_9 = arith.constant 0 : i32
    %29 = vector.broadcast %c0_i32_9 : i32 to vector<16x1xi32>
    %30 = arith.cmpi eq, %4, %29 : vector<16x1xi32>
    %cst_10 = arith.constant dense<true> : vector<16x1xi1>
    %31 = arith.xori %30, %cst_10 : vector<16x1xi1>
    %32 = arith.andi %12, %31 : vector<16x1xi1>
    %c0_11 = arith.constant 0 : index
    %c0_12 = arith.constant 0 : index
    %c0_13 = arith.constant 0 : index
    %33 = vector.load %arg4[%c0_11, %c0_12, %c0_13] : memref<1x16x1xf32, #tpu.memory_space<vmem>>, vector<1x16x1xf32>
    %34 = vector.shape_cast %33 : vector<1x16x1xf32> to vector<16x1xf32>
    %cst_14 = arith.constant 0.000000e+00 : f32
    %35 = vector.broadcast %cst_14 : f32 to vector<16x1xf32>
    %36 = arith.select %32, %28, %35 : vector<16x1xi1>, vector<16x1xf32>
    %37 = arith.addf %34, %36 : vector<16x1xf32>
    %c0_15 = arith.constant 0 : index
    %c0_16 = arith.constant 0 : index
    %c0_17 = arith.constant 0 : index
    %38 = vector.load %arg4[%c0_15, %c0_16, %c0_17] : memref<1x16x1xf32, #tpu.memory_space<vmem>>, vector<1x16x1xf32>
    %39 = vector.shape_cast %38 : vector<1x16x1xf32> to vector<16x1xf32>
    %40 = vector.shape_cast %37 : vector<16x1xf32> to vector<1x16x1xf32>
    tpu.vector_store %arg4[%c0_15, %c0_16, %c0_17], %40 {strides = array<i32>} : memref<1x16x1xf32, #tpu.memory_space<vmem>>, vector<1x16x1xf32>,
    %c0_18 = arith.constant 0 : index
    %c0_19 = arith.constant 0 : index
    %c0_20 = arith.constant 0 : index
    %41 = vector.load %arg5[%c0_18, %c0_19, %c0_20] : memref<1x16x1xf32, #tpu.memory_space<vmem>>, vector<1x16x1xf32>
    %42 = vector.shape_cast %41 : vector<1x16x1xf32> to vector<16x1xf32>
    %43 = arith.andi %12, %30 : vector<16x1xi1>
    %cst_21 = arith.constant 1.000000e+00 : f32
    %cst_22 = arith.constant 0.000000e+00 : f32
    %44 = vector.broadcast %cst_21 : f32 to vector<16x1xf32>
    %45 = vector.broadcast %cst_22 : f32 to vector<16x1xf32>
    %46 = arith.select %43, %44, %45 : vector<16x1xi1>, vector<16x1xf32>
    %47 = arith.addf %42, %46 : vector<16x1xf32>
    %c0_23 = arith.constant 0 : index
    %c0_24 = arith.constant 0 : index
    %c0_25 = arith.constant 0 : index
    %48 = vector.load %arg5[%c0_23, %c0_24, %c0_25] : memref<1x16x1xf32, #tpu.memory_space<vmem>>, vector<1x16x1xf32>
    %49 = vector.shape_cast %48 : vector<1x16x1xf32> to vector<16x1xf32>
    %50 = vector.shape_cast %47 : vector<16x1xf32> to vector<1x16x1xf32>
    tpu.vector_store %arg5[%c0_23, %c0_24, %c0_25], %50 {strides = array<i32>} : memref<1x16x1xf32, #tpu.memory_space<vmem>>, vector<1x16x1xf32>,
    return
  }
  func.func @transform_0(%arg0: i32, %arg1: i32) -> (i32, i32) {
    %c1_i32 = arith.constant 1 : i32
    %0 = arith.muli %arg0, %c1_i32 : i32
    %1 = arith.addi %0, %arg1 : i32
    %c0_i32 = arith.constant 0 : i32
    %2 = arith.minsi %1, %c0_i32 : i32
    %c0_i32_0 = arith.constant 0 : i32
    %c0_i32_1 = arith.constant 0 : i32
    return %2, %c0_i32_0 : i32, i32
  }
  func.func @transform_1(%arg0: i32, %arg1: i32) -> (i32, i32) {
    %c1_i32 = arith.constant 1 : i32
    %0 = arith.muli %arg0, %c1_i32 : i32
    %1 = arith.addi %0, %arg1 : i32
    %c0_i32 = arith.constant 0 : i32
    %2 = arith.minsi %1, %c0_i32 : i32
    %c0_i32_0 = arith.constant 0 : i32
    %c0_i32_1 = arith.constant 0 : i32
    return %2, %c0_i32_0 : i32, i32
  }
  func.func @transform_2(%arg0: i32, %arg1: i32) -> (i32, i32, i32) {
    %c0_i32 = arith.constant 0 : i32
    %c0_i32_0 = arith.constant 0 : i32
    %c0_i32_1 = arith.constant 0 : i32
    return %arg0, %c0_i32, %c0_i32_0 : i32, i32, i32
  }
  func.func @transform_3(%arg0: i32, %arg1: i32) -> (i32, i32, i32) {
    %c0_i32 = arith.constant 0 : i32
    %c0_i32_0 = arith.constant 0 : i32
    %c0_i32_1 = arith.constant 0 : i32
    return %arg0, %c0_i32, %c0_i32_0 : i32, i32, i32
  }
}

</mosaic_0001>

<llo_original>
// kernel: tpu_custom_call.1
$region0: #{tpu_custom_call.1}
  #allocation0 [shape = 'u32[]', space=smem, size = 0x4, offset = 0x4, fixed_abs, tag = 'smem constant byte address 0x4 - core index']
  #allocation1 [shape = 'u32[144,128]{1,0:T(1,128)}', space=vmem, size = 0x12000, scoped, tag = 'internal scratch']
  %s0 = inlined_call_operand.vmem [shape: f32[16,32], index: 0, kind: input, shape index: {}]
  %s1 = inlined_call_operand.vmem [shape: s32[16,1], index: 1, kind: input, shape index: {}]
  %s2 = inlined_call_operand.vmem [shape: f32[1,16,1], index: 2, kind: output, shape index: {0}]
  %s3 = inlined_call_operand.vmem [shape: f32[1,16,1], index: 3, kind: output, shape index: {1}]
  %4 = xla_tuple %s2, %s3
  %s5 = sld [smem:[#allocation0]]
  $region30: #{tpu_custom_call.1} parent=0
    _
  %s7 = ssub.s32 1, %s5
  %s8 = scalar_select 0, %s7, %s5
  // Predicated region
  $region2: #{tpu_custom_call.1} parent=0 // pred_check
    _
  $region3: #{tpu_custom_call.1} parent=0 // pred_check_branch
    %10 = sbr.rel (0) target = $region5
  $region4: #{tpu_custom_call.1} parent=0 // pred_region
    %s11 = sadd.s32 0, 0
    %p12 = scmp.lt.s32.totalorder %s11, 0
    %s13 = scalar_select %p12, %s11, 0
    %s14 = smul.u32 2, %s13
    %p15 = scmp.lt.s32.totalorder %s14, 1
    %s16 = scalar_select %p15, %s14, 1
    %s17 = smul.addr %s16, 8
    %s18 = scalar_lea.vmem %s0, %s17
    %s19 = sadd.s32 0, 0
    %p20 = scmp.lt.s32.totalorder %s19, 0
    %s21 = scalar_select %p20, %s19, 0
    %s22 = smul.u32 2, %s21
  $region5: #{tpu_custom_call.1} parent=0 // pred_fallthru
    _
  // Predicated region
  $region6: #{tpu_custom_call.1} parent=0 // pred_check
    _
  $region7: #{tpu_custom_call.1} parent=0 // pred_check_branch
    %24 = sbr.rel (0) target = $region9
  $region8: #{tpu_custom_call.1} parent=0 // pred_region
    %s25 = sadd.s32 0, 0
    %p26 = scmp.lt.s32.totalorder %s25, 0
    %s27 = scalar_select %p26, %s25, 0
    %s28 = smul.u32 2, %s27
    %p29 = scmp.lt.s32.totalorder %s28, 1
    %s30 = scalar_select %p29, %s28, 1
    %s31 = smul.addr %s30, 8
    %s32 = scalar_lea.vmem %s1, %s31
    %s33 = sadd.s32 0, 0
    %p34 = scmp.lt.s32.totalorder %s33, 0
    %s35 = scalar_select %p34, %s33, 0
    %s36 = smul.u32 2, %s35
  $region9: #{tpu_custom_call.1} parent=0 // pred_fallthru
    _
  %s37 = sadd.s32 0, 0
  %p38 = scmp.lt.s32.totalorder %s37, 0
  %s39 = scalar_select %p38, %s37, 0
  %s40 = smul.u32 2, %s39
  %p41 = scmp.lt.s32.totalorder %s40, 1
  %s42 = scalar_select %p41, %s40, 1
  %s43 = smul.addr %s42, 8
  %s44 = scalar_lea.vmem %s0, %s43
  %s45 = sadd.s32 0, 0
  %p46 = scmp.lt.s32.totalorder %s45, 0
  %s47 = scalar_select %p46, %s45, 0
  %s48 = smul.u32 2, %s47
  %p49 = scmp.lt.s32.totalorder %s48, 1
  %s50 = scalar_select %p49, %s48, 1
  %s51 = smul.addr %s50, 8
  %s52 = scalar_lea.vmem %s1, %s51
  %s53 = sadd.s32 0, 0
  %p54 = scmp.lt.s32.totalorder %s53, 0
  %s55 = scalar_select %p54, %s53, 0
  %s56 = smul.u32 2, %s55
  %p57 = scmp.lt.s32.totalorder %s56, 1
  %s58 = scalar_select %p57, %s56, 1
  %s59 = smul.addr %s58, 8
  %s60 = scalar_lea.vmem %s0, %s59
  %s61 = sadd.s32 0, 0
  %p62 = scmp.lt.s32.totalorder %s61, 0
  %s63 = scalar_select %p62, %s61, 0
  %s64 = smul.u32 2, %s63
  %s65 = sadd.s32 0, 0
  %p66 = scmp.lt.s32.totalorder %s65, 0
  %s67 = scalar_select %p66, %s65, 0
  %s68 = smul.u32 2, %s67
  %p69 = scmp.lt.s32.totalorder %s68, 1
  %s70 = scalar_select %p69, %s68, 1
  %s71 = smul.addr %s70, 8
  %s72 = scalar_lea.vmem %s1, %s71
  %s73 = sadd.s32 0, 0
  %p74 = scmp.lt.s32.totalorder %s73, 0
  %s75 = scalar_select %p74, %s73, 0
  %s76 = smul.u32 2, %s75
  %p77 = scmp.eq.s32.totalorder 0, 0
  // Predicated region
  $region10: #{tpu_custom_call.1} parent=0 // pred_check
    %p78 = pneg %p77
  $region11: #{tpu_custom_call.1} parent=0 // pred_check_branch
    %80 = sbr.rel (%p78) target = $region13
  $region12: #{tpu_custom_call.1} parent=0 // pred_region
    %vm81 = vcmask 7168
    %82 = vst.msk [vmem:[%s2] sm:$0xff] %vm81, 0.0
    %83 = vst.msk [vmem:[%s2 + $0x8] sm:$0xff] %vm81, 0.0
    %84 = vst.msk [vmem:[%s3] sm:$0xff] %vm81, 0.0
    %85 = vst.msk [vmem:[%s3 + $0x8] sm:$0xff] %vm81, 0.0
  $region13: #{tpu_custom_call.1} parent=0 // pred_fallthru
    _
  %v86 = vld [vmem:[%s60] sm:$0xff]
  %v87 = vld [vmem:[%s60 + $0x8] sm:$0xff]
  %v88 = vld [vmem:[%s72] sm:$0xff]
  %v89 = vld [vmem:[%s72 + $0x8] sm:$0xff]
  %s90 = sadd.s32 0, 0
  %s91 = smul.u32 %s90, 16
  %v92 = vlaneseq
  %v93 = vshrl.u32 %v92, 7
  %v94 = vadd.s32 %v93, 8
  %v95 = vstv %s91
  %v96 = vadd.s32 %v95, %v93
  %v97 = vadd.s32 %v95, %v94
  %vm98 = vcmp.lt.s32.totalorder %v96, 16
  %vm99 = vcmp.lt.s32.totalorder %v97, 16
  %v100 = vlaneseq
  %v101 = vand.u32 %v100, 127
  %v102 = vmax.f32 %v86, 0.0
  %v103 = vmax.f32 %v87, 0.0
  %104 = vset.pattern.permute.xlu0 0
  %105 = vperm.xlu0 %104, %v88
  %v106 = vpop.permute.xlu0 %105
  %107 = vset.pattern.permute.xlu0 0
  %108 = vperm.xlu0 %107, %v89
  %v109 = vpop.permute.xlu0 %108
  %vm110 = vcmp.eq.s32.totalorder %v101, %v106
  %vm111 = vcmp.eq.s32.totalorder %v101, %v109
  %v112 = vsel %vm110, %v86, 0.0
  %v113 = vsel %vm111, %v87, 0.0
  %v114 = vsub.f32 %v102, %v112
  %v115 = vsub.f32 %v103, %v113
  %v116 = vand.u32 2147483647, %v86
  %v117 = vand.u32 2147483647, %v87
  %v118 = vsub.f32 0.0, %v116
  %v119 = vsub.f32 0.0, %v117
  %v120 = vmul.f32 %v118, 1.442695
  %v121 = vpow.pop %v120
  %v122 = vmul.f32 %v119, 1.442695
  %v123 = vpow.pop %v122
  %v124 = vadd.f32 %v121, 1.0
  %v125 = vlog2.pop %v124
  %v126 = vmul.f32 %v125, 0.6931472
  %v127 = vmul.f32 -0.5, %v121
  %v128 = vadd.f32 %v127, 1.0
  %v129 = vmul.f32 %v128, %v121
  %v130 = vand.u32 2147483647, %v121
  %vm131 = vcmp.lt.f32.partialorder %v130, 0.0004427343
  %v132 = vsel %vm131, %v129, %v126
  %v133 = vadd.f32 %v123, 1.0
  %v134 = vlog2.pop %v133
  %v135 = vmul.f32 %v134, 0.6931472
  %v136 = vmul.f32 -0.5, %v123
  %v137 = vadd.f32 %v136, 1.0
  %v138 = vmul.f32 %v137, %v123
  %v139 = vand.u32 2147483647, %v123
  %vm140 = vcmp.lt.f32.partialorder %v139, 0.0004427343
  %v141 = vsel %vm140, %v138, %v135
  %v142 = vadd.f32 %v114, %v132
  %v143 = vadd.f32 %v115, %v141
  %vm144 = vcmask 261120
  %v146 = vsel %vm144, %v142, 0
  %v149 = vsel %vm144, %v143, 0
  %151 = vmatprep.subr.mxu0 0.0
  %152 = vmatpush1.msra.mxu0 1.0
  %153 = vmatprep.subr.mxu0 0.0
  %154 = vmatpush1.msra.mxu0 1.0
  %155 = vmatprep.subr.mxu0 0.0
  %156 = vmatpush1.msra.mxu0 1.0
  %157 = vmatprep.subr.mxu0 0.0
  %158 = vmatpush1.msra.mxu0 1.0
  %159 = vmatprep.subr.mxu0 0.0
  %160 = vmatpush1.msra.mxu0 0.0
  %161 = vmatprep.subr.mxu0 0.0
  %162 = vmatpush1.msra.mxu0 0.0
  %163 = vmatprep.subr.mxu0 0.0
  %164 = vmatpush1.msra.mxu0 0.0
  %165 = vmatprep.subr.mxu0 0.0
  %166 = vmatpush1.msra.mxu0 0.0
  %167 = vmatprep.subr.mxu0 0.0
  %168 = vmatpush1.msra.mxu0 0.0
  %169 = vmatprep.subr.mxu0 0.0
  %170 = vmatpush1.msra.mxu0 0.0
  %171 = vmatprep.subr.mxu0 0.0
  %172 = vmatpush1.msra.mxu0 0.0
  %173 = vmatprep.subr.mxu0 0.0
  %174 = vmatpush1.msra.mxu0 0.0
  %175 = vmatprep.subr.mxu0 0.0
  %176 = vmatpush1.msra.mxu0 0.0
  %177 = vmatprep.subr.mxu0 0.0
  %178 = vmatpush1.msra.mxu0 0.0
  %179 = vmatprep.subr.mxu0 0.0
  %180 = vmatpush1.msra.mxu0 0.0
  %181 = vmatprep.subr.mxu0 0.0
  %182 = vmatpush1.msra.mxu0 0.0
  %183 = vmatprep.subr.mxu0 0.0
  %184 = vmatpush1.msra.mxu0 0.0
  %185 = vmatprep.subr.mxu0 0.0
  %186 = vmatpush1.msra.mxu0 0.0
  %187 = vmatprep.subr.mxu0 0.0
  %188 = vmatpush1.msra.mxu0 0.0
  %189 = vmatprep.subr.mxu0 0.0
  %190 = vmatpush1.msra.mxu0 0.0
  %191 = vmatprep.subr.mxu0 0.0
  %192 = vmatpush1.msra.mxu0 0.0
  %193 = vmatprep.subr.mxu0 0.0
  %194 = vmatpush1.msra.mxu0 0.0
  %195 = vmatprep.subr.mxu0 0.0
  %196 = vmatpush1.msra.mxu0 0.0
  %197 = vmatprep.subr.mxu0 0.0
  %198 = vmatpush1.msra.mxu0 0.0
  %199 = vmatprep.subr.mxu0 0.0
  %200 = vmatpush1.msra.mxu0 0.0
  %201 = vmatprep.subr.mxu0 0.0
  %202 = vmatpush1.msra.mxu0 0.0
  %203 = vmatprep.subr.mxu0 0.0
  %204 = vmatpush1.msra.mxu0 0.0
  %205 = vmatprep.subr.mxu0 0.0
  %206 = vmatpush1.msra.mxu0 0.0
  %207 = vmatprep.subr.mxu0 0.0
  %208 = vmatpush1.msra.mxu0 0.0
  %209 = vmatprep.subr.mxu0 0.0
  %210 = vmatpush1.msra.mxu0 0.0
  %211 = vmatprep.subr.mxu0 0.0
  %212 = vmatpush1.msra.mxu0 0.0
  %213 = vmatprep.subr.mxu0 0.0
  %214 = vmatpush1.msra.mxu0 0.0
  %215 = vmatprep.mubr.f32.mxu0 0.0
  %216 = vmatmul.mubr.f32.gmra.mrb[0].mxu0 %v146
  %v217 = vpop.f32.mrb[0].mxu0
  %v218 = vadd.f32 0.0, %v217
  %v219 = vpop.f32.mrb[0].mxu0
  %220 = vmatprep.mubr.f32.mxu0 0.0
  %221 = vmatmul.mubr.f32.gmra.mrb[0].mxu0 %v149
  %v222 = vpop.f32.mrb[0].mxu0
  %v223 = vadd.f32 0.0, %v222
  %v224 = vpop.f32.mrb[0].mxu0
  %225 = vdwg.mxu0
  %vm226 = vcmp.eq.s32.totalorder %v88, 0
  %vm227 = vcmp.eq.s32.totalorder %v89, 0
  %vm228 = vmxor %vm226, 1
  %vm229 = vmxor %vm227, 1
  %vm230 = vmand %vm98, %vm228
  %vm231 = vmand %vm99, %vm229
  %v232 = vld [vmem:[%s2] sm:$0xff]
  %v233 = vld [vmem:[%s2 + $0x8] sm:$0xff]
  %v234 = vsel %vm230, %v218, 0.0
  %v235 = vsel %vm231, %v223, 0.0
  %v236 = vadd.f32 %v232, %v234
  %v237 = vadd.f32 %v233, %v235
  %vm238 = vcmask 7168
  %239 = vst.msk [vmem:[%s2] sm:$0xff] %vm238, %v236
  %240 = vst.msk [vmem:[%s2 + $0x8] sm:$0xff] %vm238, %v237
  %v241 = vld [vmem:[%s3] sm:$0xff]
  %v242 = vld [vmem:[%s3 + $0x8] sm:$0xff]
  %vm243 = vmand %vm98, %vm226
  %vm244 = vmand %vm99, %vm227
  %v245 = vsel %vm243, 1.0, 0.0
  %v246 = vsel %vm244, 1.0, 0.0
  %v247 = vadd.f32 %v241, %v245
  %v248 = vadd.f32 %v242, %v246
  %249 = vst.msk [vmem:[%s3] sm:$0xff] %vm238, %v247
  %250 = vst.msk [vmem:[%s3 + $0x8] sm:$0xff] %vm238, %v248
  // Predicated region
  $region14: #{tpu_custom_call.1} parent=0 // pred_check
    _
  $region15: #{tpu_custom_call.1} parent=0 // pred_check_branch
    %252 = sbr.rel (0) target = $region17
  $region16: #{tpu_custom_call.1} parent=0 // pred_region
    _
  $region17: #{tpu_custom_call.1} parent=0 // pred_fallthru
    _
  // Predicated region
  $region18: #{tpu_custom_call.1} parent=0 // pred_check
    _
  $region19: #{tpu_custom_call.1} parent=0 // pred_check_branch
    %254 = sbr.rel (0) target = $region21
  $region20: #{tpu_custom_call.1} parent=0 // pred_region
    _
  $region21: #{tpu_custom_call.1} parent=0 // pred_fallthru
    _
  // Predicated region
  $region22: #{tpu_custom_call.1} parent=0 // pred_check
    _
  $region23: #{tpu_custom_call.1} parent=0 // pred_check_branch
    %256 = sbr.rel (0) target = $region25
  $region24: #{tpu_custom_call.1} parent=0 // pred_region
    _
  $region25: #{tpu_custom_call.1} parent=0 // pred_fallthru
    _
  // Predicated region
  $region26: #{tpu_custom_call.1} parent=0 // pred_check
    _
  $region27: #{tpu_custom_call.1} parent=0 // pred_check_branch
    %258 = sbr.rel (0) target = $region29
  $region28: #{tpu_custom_call.1} parent=0 // pred_region
    _
  $region29: #{tpu_custom_call.1} parent=0 // pred_fallthru
    _

</llo_original>
